<compile_context>
chip_gen: v5e
topology: v5e:2x2
jax: 0.10.0
libtpu: 0.0.40
codegen_flags: <defaults>
</compile_context>

<pallas_src>
import functools

import jax
import jax.numpy as jnp
from jax import lax
from jax.experimental import pallas as pl
from jax.experimental.pallas import tpu as pltpu

_INT32_MAX = 2147483647


def _vmem_limit_bytes():
    """Scoped-VMEM limit: ~3/4 of physical VMEM, capped at 96 MiB.

    v5e/v6e (128 MiB physical) -> 96 MiB; v7x (64 MiB physical) -> 48 MiB.
    Falls back to a universally safe 48 MiB if the query is unavailable.
    """
    try:
        cap = int(pltpu.get_tpu_info().vmem_capacity_bytes)
    except Exception:
        cap = 64 * 1024 * 1024
    return max(32 * 1024 * 1024, min(96 * 1024 * 1024, (cap * 3) // 4))


def _tile_rows(n, c, itemsize, vmem_budget):
    """Row-tile size (multiple of 8) sized from the VMEM budget.

    Per-element live bytes ~= 2*itemsize (double-buffered native input)
    + 4 (f32 shifted) + 4 (exp) + 4 (iota/select scratch) + ~4 slack, counted
    on the lane-padded C; ~2 KiB/row covers the narrow target buffers and the
    small per-row columns.
    """
    c_pad = ((c + 127) // 128) * 128
    per_row = c_pad * (2 * itemsize + 16) + 2048
    t = vmem_budget // max(1, per_row)
    t = max(8, min(8192, (t // 8) * 8))
    n8 = ((n + 7) // 8) * 8
    t = min(t, n8)
    # Keep >= 2 grid steps so the 'parallel' axis can feed both v7x cores.
    if t >= n8 and n8 >= 16:
        t = ((n8 // 2 + 7) // 8) * 8
    return t


def _rowsum_lanes(ones_row, x):
    """sum(x, axis=1) for x:(T, C) f32, returned lane-major as (1, T).

    Transposed-RHS contraction on the MXU (the attention 'qd,kd->qk' pattern):
    the per-row sums land directly in the lane dimension, so no sublane->lane
    relayout is needed for the lane-dense store and the VPU/XLU stay free.
    precision=HIGHEST pins the f32 emulation (review correctness concern).
    """
    return lax.dot_general(
        ones_row, x,
        dimension_numbers=(((1,), (1,)), ((), ())),
        precision=lax.Precision.HIGHEST,
        preferred_element_type=jnp.float32)


def _ce_kernel(logits_ref, tgt_ref, loss_ref, *, n_total):
    """Per-sample cross entropy for one row tile, stored lane-dense.

    logits_ref: (TILE_N, C) native dtype, VMEM
    tgt_ref:    (TILE_N, 1) int32, VMEM
    loss_ref:   (1, 1, TILE_N) f32, VMEM  (rows >= n_total -> -inf)
    """
    i = pl.program_id(0)
    x_nat = logits_ref[...]
    tile_n, c = x_nat.shape

    # Row max on the native dtype (exact), cast only the (TILE_N, 1) result.
    row_max = jnp.max(x_nat, axis=1, keepdims=True).astype(jnp.float32)
    shifted = x_nat.astype(jnp.float32) - row_max            # (TILE_N, C) f32
    exp_vals = jnp.exp(shifted)                              # EUP

    # One-hot select of the target's shifted logit (exactly one nonzero/row).
    # TODO(synk): 16-bit iota/compare + native-dtype select is a further VPU
    # trim for the v7x regime.
    col = lax.broadcasted_iota(jnp.int32, (tile_n, c), 1)
    sel = jnp.where(col == tgt_ref[...], shifted, 0.0)

    # Row reductions over C on the MXU, lane-major results (1, TILE_N).
    ones_row = jnp.ones((1, c), jnp.float32)
    sum_exp = _rowsum_lanes(ones_row, exp_vals)
    tgt_shift = _rowsum_lanes(ones_row, sel)

    # CE = logsumexp(logits) - logits[target] = log(sum_exp) - shifted[target]
    loss = jnp.log(sum_exp) - tgt_shift                      # (1, TILE_N)

    # Mask rows past the true batch size (including the garbage rows of the
    # ragged last block) so they can never enter the top-k.
    gidx = i * tile_n + lax.broadcasted_iota(jnp.int32, (1, tile_n), 1)
    masked = jnp.where(gidx < n_total, loss, -jnp.inf)
    loss_ref[...] = masked.reshape(1, 1, tile_n)


def _topk_mean_kernel(loss_ref, out_ref, *, n, k):
    """Exact mean of the k largest losses via an unrolled bit-level bisection.

    loss_ref: (8, N_pad // 8) f32, lane-dense, VMEM
    out_ref:  (1, 1) f32, SMEM
    """
    rows, m = loss_ref.shape
    flat = (lax.broadcasted_iota(jnp.int32, (rows, m), 0) * m
            + lax.broadcasted_iota(jnp.int32, (rows, m), 1))
    x = jnp.where(flat < n, loss_ref[...], -jnp.inf)

    # Order-preserving f32 -> i32 key transform (handles negatives / -inf).
    # Note: NaN losses map to the largest keys and are treated as hard examples.
    bits = pltpu.bitcast(x, jnp.int32)
    keys = jnp.where(bits < 0,
                     jnp.bitwise_xor(bits, jnp.int32(_INT32_MAX)),
                     bits)

    # Binary search for the k-th largest key.  The loop is a serial latency
    # chain (vector reduce -> scalar -> vector compare), so it is fully
    # unrolled; the bracket is tightened with the data minimum.
    lo = jnp.min(keys)                       # count(keys >= min) = all >= k
    hi = jnp.int32(_INT32_MAX)
    for _ in range(32):
        mid = (lo >> 1) + (hi >> 1) + (lo & hi & 1)   # overflow-safe floor mean
        ge_k = jnp.sum((keys >= mid).astype(jnp.int32)) >= k
        lo = jnp.where(ge_k, mid, lo)
        hi = jnp.where(ge_k, hi, mid)
    kth_key = lo

    # Threshold value = the k-th largest loss (at least one key matches).
    thr = jnp.max(jnp.where(keys == kth_key, x, -jnp.inf))
    gt = keys > kth_key
    sum_gt = jnp.sum(jnp.where(gt, x, 0.0))
    cnt_gt = jnp.sum(gt.astype(jnp.float32))
    out_ref[0, 0] = (sum_gt + (jnp.float32(k) - cnt_gt) * thr) / jnp.float32(k)


def topk_loss(logits, targets, top_k=0.75):
    """JAX/Pallas equivalent of topkLoss(CrossEntropyLoss(reduction='none'))."""
    n, c = logits.shape
    # PyTorch: top_k == 1 -> mean of all; else mean of round(top_k * N) largest.
    k = n if top_k == 1 else round(top_k * n)
    k = max(1, min(int(k), n))   # guard k == 0 (mean of empty would be NaN)

    vmem_limit = _vmem_limit_bytes()
    tile_n = _tile_rows(n, c, jnp.dtype(logits.dtype).itemsize,
                        (vmem_limit * 3) // 4)
    n_tiles = pl.cdiv(n, tile_n)
    n_pad = n_tiles * tile_n

    # Targets as a narrow (N, 1) int32 column (tiny in absolute bytes; ragged
    # last block handled by boundary padding + the in-kernel row mask).
    # TODO(synk): lane-dense (1, TILE_N) targets would shave a little VMEM/DMA.
    tgt = targets.reshape(n, 1).astype(jnp.int32)

    # Phase 1: per-sample CE, parallel over row tiles, lane-dense output.
    losses = pl.pallas_call(
        functools.partial(_ce_kernel, n_total=n),
        out_shape=jax.ShapeDtypeStruct((n_tiles, 1, tile_n), jnp.float32),
        grid_spec=pltpu.PrefetchScalarGridSpec(
            num_scalar_prefetch=0,
            grid=(n_tiles,),
            in_specs=[pl.BlockSpec((tile_n, c), lambda i: (i, 0)),
                      pl.BlockSpec((tile_n, 1), lambda i: (i, 0))],
            out_specs=pl.BlockSpec((1, 1, tile_n), lambda i: (i, 0, 0)),
        ),
        compiler_params=pltpu.CompilerParams(
            dimension_semantics=("parallel",),
            vmem_limit_bytes=vmem_limit),
    )(logits, tgt)

    # Phase 2: exact top-k mean over the lane-dense loss vector (4*N bytes).
    # The (n_tiles, 1, tile_n) -> (8, n_pad//8) reshape preserves sample order.
    # TODO(synk): could be fused into the last phase-1 step (row axis would
    # then have to be 'arbitrary', losing megacore sharding of the CE phase).
    losses_dense = losses.reshape(8, n_pad // 8)
    out = pl.pallas_call(
        functools.partial(_topk_mean_kernel, n=n, k=k),
        out_shape=jax.ShapeDtypeStruct((1, 1), jnp.float32),
        in_specs=[pl.BlockSpec(memory_space=pltpu.MemorySpace.VMEM)],
        out_specs=pl.BlockSpec(memory_space=pltpu.MemorySpace.SMEM),
        compiler_params=pltpu.CompilerParams(vmem_limit_bytes=vmem_limit),
    )(losses_dense)
    return out[0, 0]


def _reference(logits, targets, top_k=0.75):
    """Plain-JAX reference for verification."""
    n = logits.shape[0]
    logp = jax.nn.log_softmax(logits.astype(jnp.float32), axis=-1)
    per_sample = -jnp.take_along_axis(
        logp, targets.reshape(n, 1).astype(jnp.int32), axis=1)[:, 0]
    k = n if top_k == 1 else round(top_k * n)
    k = max(1, min(int(k), n))
    top = jnp.sort(per_sample)[::-1][:k]
    return jnp.mean(top)


if __name__ == "__main__":
    N, C = 10, 32  # batch (not a multiple of 8 -> exercises the ragged block)
    key = jax.random.PRNGKey(0)
    k_logits, k_tgt = jax.random.split(key)
    logits = jax.random.normal(k_logits, (N, C), dtype=jnp.float32)
    targets = jax.random.randint(k_tgt, (N,), 0, C, dtype=jnp.int32)

    out = topk_loss(logits, targets, top_k=0.75)
    out = jax.block_until_ready(out)

    ref = _reference(logits, targets, top_k=0.75)
    assert jnp.allclose(out, ref, rtol=1e-5, atol=1e-5), (out, ref)

    print("KERNEL_OK")
</pallas_src>

<mosaic_0001>
module attributes {stable_mosaic.version = 11 : i64} {
  func.func @_ce_kernel(%arg0: i32, %arg1: memref<8x32xf32, #tpu.memory_space<vmem>>, %arg2: memref<8x1xi32, #tpu.memory_space<vmem>>, %arg3: memref<1x1x8xf32, #tpu.memory_space<vmem>>) attributes {dimension_semantics = [#tpu.dimension_semantics<parallel>], iteration_bounds = array<i64: 2>, scalar_prefetch = 0 : i64, scratch_operands = 0 : i64, tpu.core_type = #tpu.core_type<tc>, window_params = [{transform_indices = @transform_0, window_bounds = array<i64: 8, 32>}, {transform_indices = @transform_1, window_bounds = array<i64: 8, 1>}, {transform_indices = @transform_2, window_bounds = array<i64: 1, 1, 8>}]} {
    %c0 = arith.constant 0 : index
    %c0_0 = arith.constant 0 : index
    %0 = vector.load %arg1[%c0, %c0_0] : memref<8x32xf32, #tpu.memory_space<vmem>>, vector<8x32xf32>
    %cst = arith.constant dense<0xFF800000> : vector<8xf32>
    %1 = vector.multi_reduction <maximumf>, %0, %cst [1] : vector<8x32xf32> to vector<8xf32>
    %2 = vector.shape_cast %1 : vector<8xf32> to vector<8x1xf32>
    %3 = vector.broadcast %2 : vector<8x1xf32> to vector<8x32xf32>
    %4 = arith.subf %0, %3 : vector<8x32xf32>
    %5 = math.exp %4 : vector<8x32xf32>
    %6 = tpu.iota {dimensions = array<i32: 1>} : vector<8x32xi32>
    %c0_1 = arith.constant 0 : index
    %c0_2 = arith.constant 0 : index
    %7 = vector.load %arg2[%c0_1, %c0_2] : memref<8x1xi32, #tpu.memory_space<vmem>>, vector<8x1xi32>
    %8 = vector.broadcast %7 : vector<8x1xi32> to vector<8x32xi32>
    %9 = arith.cmpi eq, %6, %8 : vector<8x32xi32>
    %cst_3 = arith.constant 0.000000e+00 : f32
    %10 = vector.broadcast %cst_3 : f32 to vector<8x32xf32>
    %11 = arith.select %9, %4, %10 : vector<8x32xi1>, vector<8x32xf32>
    %cst_4 = arith.constant 1.000000e+00 : f32
    %12 = vector.broadcast %cst_4 : f32 to vector<1x32xf32>
    %cst_5 = arith.constant dense<0.000000e+00> : vector<1x8xf32>
    %13 = tpu.matmul %12, %5, %cst_5 {dimension_numbers = #tpu.dot_dimension_numbers<[1], [1], [0], [0], [0, 0, 1, 0], [], []>, precision = #tpu.contract_precision<fp32>} : vector<1x32xf32>, vector<8x32xf32>, vector<1x8xf32> -> vector<1x8xf32>
    %cst_6 = arith.constant dense<0.000000e+00> : vector<1x8xf32>
    %14 = tpu.matmul %12, %11, %cst_6 {dimension_numbers = #tpu.dot_dimension_numbers<[1], [1], [0], [0], [0, 0, 1, 0], [], []>, precision = #tpu.contract_precision<fp32>} : vector<1x32xf32>, vector<8x32xf32>, vector<1x8xf32> -> vector<1x8xf32>
    %15 = math.log %13 : vector<1x8xf32>
    %16 = arith.subf %15, %14 : vector<1x8xf32>
    %c8_i32 = arith.constant 8 : i32
    %17 = arith.muli %arg0, %c8_i32 : i32
    %18 = tpu.iota {dimensions = array<i32: 1>} : vector<1x8xi32>
    %19 = vector.broadcast %17 : i32 to vector<1x8xi32>
    %20 = arith.addi %19, %18 : vector<1x8xi32>
    %c10_i32 = arith.constant 10 : i32
    %21 = vector.broadcast %c10_i32 : i32 to vector<1x8xi32>
    %22 = arith.cmpi slt, %20, %21 : vector<1x8xi32>
    %cst_7 = arith.constant 0xFF800000 : f32
    %23 = vector.broadcast %cst_7 : f32 to vector<1x8xf32>
    %24 = arith.select %22, %16, %23 : vector<1x8xi1>, vector<1x8xf32>
    %25 = vector.shape_cast %24 : vector<1x8xf32> to vector<1x1x8xf32>
    %c0_8 = arith.constant 0 : index
    %c0_9 = arith.constant 0 : index
    %c0_10 = arith.constant 0 : index
    %26 = vector.load %arg3[%c0_8, %c0_9, %c0_10] : memref<1x1x8xf32, #tpu.memory_space<vmem>>, vector<1x1x8xf32>
    tpu.vector_store %arg3[%c0_8, %c0_9, %c0_10], %25 {strides = array<i32>} : memref<1x1x8xf32, #tpu.memory_space<vmem>>, vector<1x1x8xf32>,
    return
  }
  func.func @transform_0(%arg0: i32) -> (i32, i32) {
    %c0_i32 = arith.constant 0 : i32
    %c0_i32_0 = arith.constant 0 : i32
    return %arg0, %c0_i32 : i32, i32
  }
  func.func @transform_1(%arg0: i32) -> (i32, i32) {
    %c0_i32 = arith.constant 0 : i32
    %c0_i32_0 = arith.constant 0 : i32
    return %arg0, %c0_i32 : i32, i32
  }
  func.func @transform_2(%arg0: i32) -> (i32, i32, i32) {
    %c0_i32 = arith.constant 0 : i32
    %c0_i32_0 = arith.constant 0 : i32
    %c0_i32_1 = arith.constant 0 : i32
    return %arg0, %c0_i32, %c0_i32_0 : i32, i32, i32
  }
}

</mosaic_0001>

<llo_original>
// kernel: tpu_custom_call.1
$region0: #{tpu_custom_call.1}
  #allocation0 [shape = 'u32[]', space=smem, size = 0x4, offset = 0x4, fixed_abs, tag = 'smem constant byte address 0x4 - core index']
  #allocation1 [shape = 'u32[72,128]{1,0:T(1,128)}', space=vmem, size = 0x9000, scoped, tag = 'internal scratch']
  %s0 = inlined_call_operand.vmem [shape: f32[10,32], index: 0, kind: input, shape index: {}]
  %s1 = inlined_call_operand.vmem [shape: s32[10,1], index: 1, kind: input, shape index: {}]
  %s2 = inlined_call_operand.hbm [shape: f32[2,1,8], index: 2, kind: output, shape index: {}]
  %s3 = sld [smem:[#allocation0]]
  $region41: #{tpu_custom_call.1} parent=0
    _
  %s5 = ssub.s32 1, %s3
  %s6 = scalar_select 0, %s5, %s3
  $region1: #{tpu_custom_call.1} parent=0
    #allocation2 [shape = 'u8[1024]{0}', space=vmem, size = 0x400, scoped, tag = 'output window, operand 0']
    #allocation3 [shape = 's32[2]{0}', space=sflag, size = 0x8, scoped, tag = 'scoped memory for tpu_custom_call.1']
    %7 = vsyncpa [#allocation3], 0
    %s8 = scalar_lea.sflag [#allocation3], 1
    %9 = vsyncpa %s8, 0
    loop: start=0, step=1, limit=4
    $region2: #{tpu_custom_call.1} parent=1 // loop_pre_header
      _
    $region3: #{tpu_custom_call.1} parent=1 // loop_header
      %s11 = sphi 0, %s15
      %p12 = scmp.ge.s32.totalorder %s11, 4
      %s21 = sphi 0, %s23
      %s24 = sphi 0, %s21
      %s25 = sphi 0, %s24
      %s41 = sphi 0, %s25
      %s47 = sphi 0, %s49
      %s50 = sphi 0, %s47
      %s51 = sphi 0, %s50
      %s67 = sphi 0, %s51
      %s73 = sphi 0, %s75
      %s76 = sphi 0, %s73
      %s77 = sphi 0, %s76
      %s93 = sphi 0, %s77
    $region4: #{tpu_custom_call.1} parent=1 // loop_header_branch
      %14 = sbr.rel (%p12) target = $region8
    $region5: #{tpu_custom_call.1} parent=1 // loop_body
      %s16 = ssub.s32 %s11, 1
      %s17 = ssub.s32 %s11, 2
      %s18 = sadd.s32 %s11, 1
      %s19 = ssub.s32 %s11, %s18
      %p20 = scmp.eq.s32.totalorder %s19, 0
      %s22 = sadd.s32 %s21, 1
      %s23 = scalar_select %p20, %s21, %s22
      %p26 = pneg %p20
      %p27 = scmp.eq.s32.totalorder %s11, 1
      %p28 = por %p26, %p27
      %p29 = scmp.ne.s32.totalorder %s21, %s24
      %p30 = scmp.eq.s32.totalorder %s11, 0
      %p31 = por %p29, %p30
      %p32 = scmp.ne.s32.totalorder %s21, %s24
      %p33 = scmp.eq.s32.totalorder %s16, 1
      %p34 = por %p32, %p33
      %p35 = scmp.ne.s32.totalorder %s24, %s25
      %p36 = scmp.eq.s32.totalorder %s16, 0
      %p37 = por %p35, %p36
      %p38 = scmp.ne.s32.totalorder %s24, %s25
      %p39 = scmp.eq.s32.totalorder %s17, 1
      %p40 = por %p38, %p39
      %p42 = scmp.ne.s32.totalorder %s25, %s41
      %p43 = scmp.eq.s32.totalorder %s17, 0
      %p44 = por %p42, %p43
      %s45 = ssub.s32 %s11, %s18
      %p46 = scmp.eq.s32.totalorder %s45, 0
      %s48 = sadd.s32 %s47, 1
      %s49 = scalar_select %p46, %s47, %s48
      %p52 = pneg %p46
      %p53 = scmp.eq.s32.totalorder %s11, 1
      %p54 = por %p52, %p53
      %p55 = scmp.ne.s32.totalorder %s47, %s50
      %p56 = scmp.eq.s32.totalorder %s11, 0
      %p57 = por %p55, %p56
      %p58 = scmp.ne.s32.totalorder %s47, %s50
      %p59 = scmp.eq.s32.totalorder %s16, 1
      %p60 = por %p58, %p59
      %p61 = scmp.ne.s32.totalorder %s50, %s51
      %p62 = scmp.eq.s32.totalorder %s16, 0
      %p63 = por %p61, %p62
      %p64 = scmp.ne.s32.totalorder %s50, %s51
      %p65 = scmp.eq.s32.totalorder %s17, 1
      %p66 = por %p64, %p65
      %p68 = scmp.ne.s32.totalorder %s51, %s67
      %p69 = scmp.eq.s32.totalorder %s17, 0
      %p70 = por %p68, %p69
      %s71 = ssub.s32 %s11, %s18
      %p72 = scmp.eq.s32.totalorder %s71, 0
      %s74 = sadd.s32 %s73, 1
      %s75 = scalar_select %p72, %s73, %s74
      %p78 = pneg %p72
      %p79 = scmp.eq.s32.totalorder %s11, 1
      %p80 = por %p78, %p79
      %p81 = scmp.ne.s32.totalorder %s73, %s76
      %p82 = scmp.eq.s32.totalorder %s11, 0
      %p83 = por %p81, %p82
      %p84 = scmp.ne.s32.totalorder %s73, %s76
      %p85 = scmp.eq.s32.totalorder %s16, 1
      %p86 = por %p84, %p85
      %p87 = scmp.ne.s32.totalorder %s76, %s77
      %p88 = scmp.eq.s32.totalorder %s16, 0
      %p89 = por %p87, %p88
      %p90 = scmp.ne.s32.totalorder %s76, %s77
      %p91 = scmp.eq.s32.totalorder %s17, 1
      %p92 = por %p90, %p91
      %p94 = scmp.ne.s32.totalorder %s77, %s93
      %p95 = scmp.eq.s32.totalorder %s17, 0
      %p96 = por %p94, %p95
      %p97 = scmp.le.s32.totalorder 1, %s11
      %p98 = scmp.lt.s32.totalorder %s11, 3
      %p99 = pnand %p97, %p98
      %p100 = pneg %p99
      // Predicated region
      $region9: #{tpu_custom_call.1} parent=5 // pred_check
        _
      $region10: #{tpu_custom_call.1} parent=5 // pred_check_branch
        %102 = sbr.rel (%p99) target = $region12
      $region11: #{tpu_custom_call.1} parent=5 // pred_region
        %s103 = ssub.s32 %s11, 1
      $region12: #{tpu_custom_call.1} parent=5 // pred_fallthru
        _
      %p104 = scmp.lt.s32.totalorder %s11, 2
      // Predicated region
      $region13: #{tpu_custom_call.1} parent=5 // pred_check
        %p105 = pneg %p104
      $region14: #{tpu_custom_call.1} parent=5 // pred_check_branch
        %107 = sbr.rel (%p105) target = $region16
      $region15: #{tpu_custom_call.1} parent=5 // pred_region
        // Predicated region
        $region17: #{tpu_custom_call.1} parent=15 // pred_check
          %p108 = pneg %p31
        $region18: #{tpu_custom_call.1} parent=15 // pred_check_branch
          %110 = sbr.rel (%p108) target = $region20
        $region19: #{tpu_custom_call.1} parent=15 // pred_region
          %p111 = scmp.lt.s32.totalorder %s11, 1
          %s112 = scalar_select %p111, %s11, 1
          %s113 = smul.addr %s112, 8
          %s114 = scalar_lea.vmem %s0, %s113
        $region20: #{tpu_custom_call.1} parent=15 // pred_fallthru
          _
        // Predicated region
        $region21: #{tpu_custom_call.1} parent=15 // pred_check
          %p115 = pneg %p57
        $region22: #{tpu_custom_call.1} parent=15 // pred_check_branch
          %117 = sbr.rel (%p115) target = $region24
        $region23: #{tpu_custom_call.1} parent=15 // pred_region
          %p118 = scmp.lt.s32.totalorder %s11, 1
          %s119 = scalar_select %p118, %s11, 1
          %s120 = smul.addr %s119, 8
          %s121 = scalar_lea.vmem %s1, %s120
        $region24: #{tpu_custom_call.1} parent=15 // pred_fallthru
          _
      $region16: #{tpu_custom_call.1} parent=5 // pred_fallthru
        _
      %p122 = scmp.le.s32.totalorder 1, %s11
      %p123 = scmp.lt.s32.totalorder %s11, 3
      %p124 = pnand %p122, %p123
      %p125 = pneg %p124
      // Predicated region
      $region25: #{tpu_custom_call.1} parent=5 // pred_check
        _
      $region26: #{tpu_custom_call.1} parent=5 // pred_check_branch
        %127 = sbr.rel (%p124) target = $region28
      $region27: #{tpu_custom_call.1} parent=5 // pred_region
        %s128 = ssub.s32 %s11, 1
        %p129 = scmp.lt.s32.totalorder %s16, 1
        %s130 = scalar_select %p129, %s16, 1
        %s131 = smul.addr %s130, 8
        %s132 = scalar_lea.vmem %s0, %s131
        %p133 = pneg %p37
        %p134 = pneg %p34
        %p135 = scmp.lt.s32.totalorder %s16, 1
        %s136 = scalar_select %p135, %s16, 1
        %s137 = smul.addr %s136, 8
        %s138 = scalar_lea.vmem %s1, %s137
        %p139 = pneg %p63
        %p140 = pneg %p60
        %p141 = pneg %p89
        %p142 = pneg %p86
        %s143 = sand.u32 %s76, 1
        %s144 = scalar_lea.sflag [#allocation3], %s143
        %s145 = sand.u32 %s76, 1
        %s146 = scalar_lea.vmem [#allocation2], %s145
        %p147 = scmp.lt.s32.totalorder %s16, 1
        %s148 = scalar_select %p147, %s16, 1
        %s149 = smul.addr %s148, 8
        %s150 = scalar_lea.vmem %s0, %s149
        %p151 = scmp.lt.s32.totalorder %s16, 1
        %s152 = scalar_select %p151, %s16, 1
        %s153 = smul.addr %s152, 8
        %s154 = scalar_lea.vmem %s1, %s153
        %v155 = vld [vmem:[%s150] sm:$0xff]
        %vm156 = vcmask 261120
        %v157 = vsel %vm156, %v155, -inf
        %158 = vmax.xlane.f32.xlu0 %v157
        %v159 = vpop.xlane.xlu0 %158
        %v160 = vsub.f32 %v155, %v159
        %v161 = vmul.f32 %v160, 1.442695
        %v162 = vpow.pop %v161
        %v163 = vlaneseq
        %v164 = vand.u32 %v163, 127
        %v165 = vld [vmem:[%s154] sm:$0xff]
        %166 = vset.pattern.permute.xlu0 0
        %167 = vperm.xlu0 %166, %v165
        %v168 = vpop.permute.xlu0 %167
        %vm169 = vcmp.eq.s32.totalorder %v164, %v168
        %v170 = vsel %vm169, %v160, 0.0
        %v172 = vsel %vm156, 1.0, 0
        %v175 = vsel %vm156, %v162, 0
        %177 = vmatpush.xpose.msra.mxu0 0.0
        %178 = vmatpush.xpose.msra.mxu0 0.0
        %179 = vmatpush.xpose.msra.mxu0 0.0
        %180 = vmatpush.xpose.msra.mxu0 0.0
        %181 = vmatpush.xpose.msra.mxu0 0.0
        %182 = vmatpush.xpose.msra.mxu0 0.0
        %183 = vmatpush.xpose.msra.mxu0 0.0
        %184 = vmatpush.xpose.msra.mxu0 0.0
        %185 = vmatpush.xpose.msra.mxu0 0.0
        %186 = vmatpush.xpose.msra.mxu0 0.0
        %187 = vmatpush.xpose.msra.mxu0 0.0
        %188 = vmatpush.xpose.msra.mxu0 0.0
        %189 = vmatpush.xpose.msra.mxu0 0.0
        %190 = vmatpush.xpose.msra.mxu0 0.0
        %191 = vmatpush.xpose.msra.mxu0 0.0
        %v192 = vand.u32 %v175, 4294901760
        %193 = vmatpush.xpose.msra.mxu0 %v192
        %v194 = vand.u32 %v172, 4294901760
        %v195 = vsub.f32 %v172, %v194
        %v196 = vand.u32 %v195, 4294901760
        %v197 = vsub.f32 %v195, %v196
        %v198 = vand.u32 %v197, 4294901760
        %199 = vmatmul.f32.gmra.mxu0 %v198
        %v200 = vpop.f32.mrf.mxu0
        %v201 = vadd.f32 0.0, %v200
        %202 = vdwg.mxu0
        %203 = vmatpush.xpose.msra.mxu0 0.0
        %204 = vmatpush.xpose.msra.mxu0 0.0
        %205 = vmatpush.xpose.msra.mxu0 0.0
        %206 = vmatpush.xpose.msra.mxu0 0.0
        %207 = vmatpush.xpose.msra.mxu0 0.0
        %208 = vmatpush.xpose.msra.mxu0 0.0
        %209 = vmatpush.xpose.msra.mxu0 0.0
        %210 = vmatpush.xpose.msra.mxu0 0.0
        %211 = vmatpush.xpose.msra.mxu0 0.0
        %212 = vmatpush.xpose.msra.mxu0 0.0
        %213 = vmatpush.xpose.msra.mxu0 0.0
        %214 = vmatpush.xpose.msra.mxu0 0.0
        %215 = vmatpush.xpose.msra.mxu0 0.0
        %216 = vmatpush.xpose.msra.mxu0 0.0
        %217 = vmatpush.xpose.msra.mxu0 0.0
        %v218 = vand.u32 %v175, 4294901760
        %v219 = vsub.f32 %v175, %v218
        %v220 = vand.u32 %v219, 4294901760
        %v221 = vsub.f32 %v219, %v220
        %v222 = vand.u32 %v221, 4294901760
        %223 = vmatpush.xpose.msra.mxu0 %v222
        %v224 = vand.u32 %v172, 4294901760
        %225 = vmatmul.f32.gmra.mxu0 %v224
        %v226 = vpop.f32.mrf.mxu0
        %v227 = vadd.f32 %v201, %v226
        %228 = vdwg.mxu0
        %229 = vmatpush.xpose.msra.mxu0 0.0
        %230 = vmatpush.xpose.msra.mxu0 0.0
        %231 = vmatpush.xpose.msra.mxu0 0.0
        %232 = vmatpush.xpose.msra.mxu0 0.0
        %233 = vmatpush.xpose.msra.mxu0 0.0
        %234 = vmatpush.xpose.msra.mxu0 0.0
        %235 = vmatpush.xpose.msra.mxu0 0.0
        %236 = vmatpush.xpose.msra.mxu0 0.0
        %237 = vmatpush.xpose.msra.mxu0 0.0
        %238 = vmatpush.xpose.msra.mxu0 0.0
        %239 = vmatpush.xpose.msra.mxu0 0.0
        %240 = vmatpush.xpose.msra.mxu0 0.0
        %241 = vmatpush.xpose.msra.mxu0 0.0
        %242 = vmatpush.xpose.msra.mxu0 0.0
        %243 = vmatpush.xpose.msra.mxu0 0.0
        %v244 = vand.u32 %v175, 4294901760
        %v245 = vsub.f32 %v175, %v244
        %246 = vmatpush.xpose.msra.mxu0 %v245
        %v247 = vand.u32 %v172, 4294901760
        %v248 = vsub.f32 %v172, %v247
        %249 = vmatmul.f32.gmra.mxu0 %v248
        %v250 = vpop.f32.mrf.mxu0
        %v251 = vadd.f32 %v227, %v250
        %252 = vdwg.mxu0
        %253 = vmatpush.xpose.msra.mxu0 0.0
        %254 = vmatpush.xpose.msra.mxu0 0.0
        %255 = vmatpush.xpose.msra.mxu0 0.0
        %256 = vmatpush.xpose.msra.mxu0 0.0
        %257 = vmatpush.xpose.msra.mxu0 0.0
        %258 = vmatpush.xpose.msra.mxu0 0.0
        %259 = vmatpush.xpose.msra.mxu0 0.0
        %260 = vmatpush.xpose.msra.mxu0 0.0
        %261 = vmatpush.xpose.msra.mxu0 0.0
        %262 = vmatpush.xpose.msra.mxu0 0.0
        %263 = vmatpush.xpose.msra.mxu0 0.0
        %264 = vmatpush.xpose.msra.mxu0 0.0
        %265 = vmatpush.xpose.msra.mxu0 0.0
        %266 = vmatpush.xpose.msra.mxu0 0.0
        %267 = vmatpush.xpose.msra.mxu0 0.0
        %v268 = vand.u32 %v175, 4294901760
        %269 = vmatpush.xpose.msra.mxu0 %v268
        %v270 = vand.u32 %v172, 4294901760
        %v271 = vsub.f32 %v172, %v270
        %v272 = vand.u32 %v271, 4294901760
        %273 = vmatmul.f32.gmra.mxu0 %v272
        %v274 = vpop.f32.mrf.mxu0
        %v275 = vadd.f32 %v251, %v274
        %276 = vdwg.mxu0
        %277 = vmatpush.xpose.msra.mxu0 0.0
        %278 = vmatpush.xpose.msra.mxu0 0.0
        %279 = vmatpush.xpose.msra.mxu0 0.0
        %280 = vmatpush.xpose.msra.mxu0 0.0
        %281 = vmatpush.xpose.msra.mxu0 0.0
        %282 = vmatpush.xpose.msra.mxu0 0.0
        %283 = vmatpush.xpose.msra.mxu0 0.0
        %284 = vmatpush.xpose.msra.mxu0 0.0
        %285 = vmatpush.xpose.msra.mxu0 0.0
        %286 = vmatpush.xpose.msra.mxu0 0.0
        %287 = vmatpush.xpose.msra.mxu0 0.0
        %288 = vmatpush.xpose.msra.mxu0 0.0
        %289 = vmatpush.xpose.msra.mxu0 0.0
        %290 = vmatpush.xpose.msra.mxu0 0.0
        %291 = vmatpush.xpose.msra.mxu0 0.0
        %v292 = vand.u32 %v175, 4294901760
        %v293 = vsub.f32 %v175, %v292
        %v294 = vand.u32 %v293, 4294901760
        %295 = vmatpush.xpose.msra.mxu0 %v294
        %v296 = vand.u32 %v172, 4294901760
        %297 = vmatmul.f32.gmra.mxu0 %v296
        %v298 = vpop.f32.mrf.mxu0
        %v299 = vadd.f32 %v275, %v298
        %300 = vdwg.mxu0
        %301 = vmatpush.xpose.msra.mxu0 0.0
        %302 = vmatpush.xpose.msra.mxu0 0.0
        %303 = vmatpush.xpose.msra.mxu0 0.0
        %304 = vmatpush.xpose.msra.mxu0 0.0
        %305 = vmatpush.xpose.msra.mxu0 0.0
        %306 = vmatpush.xpose.msra.mxu0 0.0
        %307 = vmatpush.xpose.msra.mxu0 0.0
        %308 = vmatpush.xpose.msra.mxu0 0.0
        %309 = vmatpush.xpose.msra.mxu0 0.0
        %310 = vmatpush.xpose.msra.mxu0 0.0
        %311 = vmatpush.xpose.msra.mxu0 0.0
        %312 = vmatpush.xpose.msra.mxu0 0.0
        %313 = vmatpush.xpose.msra.mxu0 0.0
        %314 = vmatpush.xpose.msra.mxu0 0.0
        %315 = vmatpush.xpose.msra.mxu0 0.0
        %v316 = vand.u32 %v175, 4294901760
        %317 = vmatpush.xpose.msra.mxu0 %v316
        %v318 = vand.u32 %v172, 4294901760
        %319 = vmatmul.f32.gmra.mxu0 %v318
        %v320 = vpop.f32.mrf.mxu0
        %v321 = vadd.f32 %v299, %v320
        %322 = vdwg.mxu0
        %v324 = vsel %vm156, %v170, 0
        %326 = vmatpush.xpose.msra.mxu0 0.0
        %327 = vmatpush.xpose.msra.mxu0 0.0
        %328 = vmatpush.xpose.msra.mxu0 0.0
        %329 = vmatpush.xpose.msra.mxu0 0.0
        %330 = vmatpush.xpose.msra.mxu0 0.0
        %331 = vmatpush.xpose.msra.mxu0 0.0
        %332 = vmatpush.xpose.msra.mxu0 0.0
        %333 = vmatpush.xpose.msra.mxu0 0.0
        %334 = vmatpush.xpose.msra.mxu0 0.0
        %335 = vmatpush.xpose.msra.mxu0 0.0
        %336 = vmatpush.xpose.msra.mxu0 0.0
        %337 = vmatpush.xpose.msra.mxu0 0.0
        %338 = vmatpush.xpose.msra.mxu0 0.0
        %339 = vmatpush.xpose.msra.mxu0 0.0
        %340 = vmatpush.xpose.msra.mxu0 0.0
        %v341 = vand.u32 %v324, 4294901760
        %342 = vmatpush.xpose.msra.mxu0 %v341
        %v343 = vand.u32 %v172, 4294901760
        %v344 = vsub.f32 %v172, %v343
        %v345 = vand.u32 %v344, 4294901760
        %v346 = vsub.f32 %v344, %v345
        %v347 = vand.u32 %v346, 4294901760
        %348 = vmatmul.f32.gmra.mxu0 %v347
        %v349 = vpop.f32.mrf.mxu0
        %v350 = vadd.f32 0.0, %v349
        %351 = vdwg.mxu0
        %352 = vmatpush.xpose.msra.mxu0 0.0
        %353 = vmatpush.xpose.msra.mxu0 0.0
        %354 = vmatpush.xpose.msra.mxu0 0.0
        %355 = vmatpush.xpose.msra.mxu0 0.0
        %356 = vmatpush.xpose.msra.mxu0 0.0
        %357 = vmatpush.xpose.msra.mxu0 0.0
        %358 = vmatpush.xpose.msra.mxu0 0.0
        %359 = vmatpush.xpose.msra.mxu0 0.0
        %360 = vmatpush.xpose.msra.mxu0 0.0
        %361 = vmatpush.xpose.msra.mxu0 0.0
        %362 = vmatpush.xpose.msra.mxu0 0.0
        %363 = vmatpush.xpose.msra.mxu0 0.0
        %364 = vmatpush.xpose.msra.mxu0 0.0
        %365 = vmatpush.xpose.msra.mxu0 0.0
        %366 = vmatpush.xpose.msra.mxu0 0.0
        %v367 = vand.u32 %v324, 4294901760
        %v368 = vsub.f32 %v324, %v367
        %v369 = vand.u32 %v368, 4294901760
        %v370 = vsub.f32 %v368, %v369
        %v371 = vand.u32 %v370, 4294901760
        %372 = vmatpush.xpose.msra.mxu0 %v371
        %v373 = vand.u32 %v172, 4294901760
        %374 = vmatmul.f32.gmra.mxu0 %v373
        %v375 = vpop.f32.mrf.mxu0
        %v376 = vadd.f32 %v350, %v375
        %377 = vdwg.mxu0
        %378 = vmatpush.xpose.msra.mxu0 0.0
        %379 = vmatpush.xpose.msra.mxu0 0.0
        %380 = vmatpush.xpose.msra.mxu0 0.0
        %381 = vmatpush.xpose.msra.mxu0 0.0
        %382 = vmatpush.xpose.msra.mxu0 0.0
        %383 = vmatpush.xpose.msra.mxu0 0.0
        %384 = vmatpush.xpose.msra.mxu0 0.0
        %385 = vmatpush.xpose.msra.mxu0 0.0
        %386 = vmatpush.xpose.msra.mxu0 0.0
        %387 = vmatpush.xpose.msra.mxu0 0.0
        %388 = vmatpush.xpose.msra.mxu0 0.0
        %389 = vmatpush.xpose.msra.mxu0 0.0
        %390 = vmatpush.xpose.msra.mxu0 0.0
        %391 = vmatpush.xpose.msra.mxu0 0.0
        %392 = vmatpush.xpose.msra.mxu0 0.0
        %v393 = vand.u32 %v324, 4294901760
        %v394 = vsub.f32 %v324, %v393
        %395 = vmatpush.xpose.msra.mxu0 %v394
        %v396 = vand.u32 %v172, 4294901760
        %v397 = vsub.f32 %v172, %v396
        %398 = vmatmul.f32.gmra.mxu0 %v397
        %v399 = vpop.f32.mrf.mxu0
        %v400 = vadd.f32 %v376, %v399
        %401 = vdwg.mxu0
        %402 = vmatpush.xpose.msra.mxu0 0.0
        %403 = vmatpush.xpose.msra.mxu0 0.0
        %404 = vmatpush.xpose.msra.mxu0 0.0
        %405 = vmatpush.xpose.msra.mxu0 0.0
        %406 = vmatpush.xpose.msra.mxu0 0.0
        %407 = vmatpush.xpose.msra.mxu0 0.0
        %408 = vmatpush.xpose.msra.mxu0 0.0
        %409 = vmatpush.xpose.msra.mxu0 0.0
        %410 = vmatpush.xpose.msra.mxu0 0.0
        %411 = vmatpush.xpose.msra.mxu0 0.0
        %412 = vmatpush.xpose.msra.mxu0 0.0
        %413 = vmatpush.xpose.msra.mxu0 0.0
        %414 = vmatpush.xpose.msra.mxu0 0.0
        %415 = vmatpush.xpose.msra.mxu0 0.0
        %416 = vmatpush.xpose.msra.mxu0 0.0
        %v417 = vand.u32 %v324, 4294901760
        %418 = vmatpush.xpose.msra.mxu0 %v417
        %v419 = vand.u32 %v172, 4294901760
        %v420 = vsub.f32 %v172, %v419
        %v421 = vand.u32 %v420, 4294901760
        %422 = vmatmul.f32.gmra.mxu0 %v421
        %v423 = vpop.f32.mrf.mxu0
        %v424 = vadd.f32 %v400, %v423
        %425 = vdwg.mxu0
        %426 = vmatpush.xpose.msra.mxu0 0.0
        %427 = vmatpush.xpose.msra.mxu0 0.0
        %428 = vmatpush.xpose.msra.mxu0 0.0
        %429 = vmatpush.xpose.msra.mxu0 0.0
        %430 = vmatpush.xpose.msra.mxu0 0.0
        %431 = vmatpush.xpose.msra.mxu0 0.0
        %432 = vmatpush.xpose.msra.mxu0 0.0
        %433 = vmatpush.xpose.msra.mxu0 0.0
        %434 = vmatpush.xpose.msra.mxu0 0.0
        %435 = vmatpush.xpose.msra.mxu0 0.0
        %436 = vmatpush.xpose.msra.mxu0 0.0
        %437 = vmatpush.xpose.msra.mxu0 0.0
        %438 = vmatpush.xpose.msra.mxu0 0.0
        %439 = vmatpush.xpose.msra.mxu0 0.0
        %440 = vmatpush.xpose.msra.mxu0 0.0
        %v441 = vand.u32 %v324, 4294901760
        %v442 = vsub.f32 %v324, %v441
        %v443 = vand.u32 %v442, 4294901760
        %444 = vmatpush.xpose.msra.mxu0 %v443
        %v445 = vand.u32 %v172, 4294901760
        %446 = vmatmul.f32.gmra.mxu0 %v445
        %v447 = vpop.f32.mrf.mxu0
        %v448 = vadd.f32 %v424, %v447
        %449 = vdwg.mxu0
        %450 = vmatpush.xpose.msra.mxu0 0.0
        %451 = vmatpush.xpose.msra.mxu0 0.0
        %452 = vmatpush.xpose.msra.mxu0 0.0
        %453 = vmatpush.xpose.msra.mxu0 0.0
        %454 = vmatpush.xpose.msra.mxu0 0.0
        %455 = vmatpush.xpose.msra.mxu0 0.0
        %456 = vmatpush.xpose.msra.mxu0 0.0
        %457 = vmatpush.xpose.msra.mxu0 0.0
        %458 = vmatpush.xpose.msra.mxu0 0.0
        %459 = vmatpush.xpose.msra.mxu0 0.0
        %460 = vmatpush.xpose.msra.mxu0 0.0
        %461 = vmatpush.xpose.msra.mxu0 0.0
        %462 = vmatpush.xpose.msra.mxu0 0.0
        %463 = vmatpush.xpose.msra.mxu0 0.0
        %464 = vmatpush.xpose.msra.mxu0 0.0
        %v465 = vand.u32 %v324, 4294901760
        %466 = vmatpush.xpose.msra.mxu0 %v465
        %v467 = vand.u32 %v172, 4294901760
        %468 = vmatmul.f32.gmra.mxu0 %v467
        %v469 = vpop.f32.mrf.mxu0
        %v470 = vadd.f32 %v448, %v469
        %471 = vdwg.mxu0
        %v472 = vlog2.pop %v321
        %v473 = vmul.f32 %v472, 0.6931472
        %v474 = vsub.f32 %v473, %v470
        %s475 = smul.u32 %s16, 8
        %v476 = vstv %s475
        %v477 = vadd.s32 %v476, %v164
        %vm478 = vcmp.lt.s32.totalorder %v477, 10
        %v479 = vsel %vm478, %v474, -inf
        %vm480 = vcmask 57344
        %481 = vst.msk [vmem:[%s146] sm:$0x1] %vm480, %v479
        %s482 = sand.u32 %s76, 1
        %s483 = scalar_lea.sflag [#allocation3], %s482
        %s484 = sand.u32 %s76, 1
        %s485 = scalar_lea.vmem [#allocation2], %s484
        // Predicated region
        $region29: #{tpu_custom_call.1} parent=27 // pred_check
          %p486 = pneg %p86
        $region30: #{tpu_custom_call.1} parent=27 // pred_check_branch
          %488 = sbr.rel (%p486) target = $region32
        $region31: #{tpu_custom_call.1} parent=27 // pred_region
          %490 = vsyncadd %s483, 0
          %s491 = scalar_lea.hbm %s2, %s16
          %s493 = sshll.u32 %s485, 4
          %s494 = int_to_ptr.vmem [resolvable:$true] %s493
          %s495 = sshll.u32 %s491, 4
          %s496 = int_to_ptr.hbm [resolvable:$true] %s495
          %498 = dma.vmem_to_hbm [thread:$0]  %s494, 16, %s496, %s483
        $region32: #{tpu_custom_call.1} parent=27 // pred_fallthru
          _
      $region28: #{tpu_custom_call.1} parent=5 // pred_fallthru
        _
      %p499 = scmp.le.s32.totalorder 2, %s11
      // Predicated region
      $region33: #{tpu_custom_call.1} parent=5 // pred_check
        %p500 = pneg %p499
      $region34: #{tpu_custom_call.1} parent=5 // pred_check_branch
        %502 = sbr.rel (%p500) target = $region36
      $region35: #{tpu_custom_call.1} parent=5 // pred_region
        %s503 = ssub.s32 %s11, 2
        // Predicated region
        $region37: #{tpu_custom_call.1} parent=35 // pred_check
          %p504 = pneg %p92
        $region38: #{tpu_custom_call.1} parent=35 // pred_check_branch
          %506 = sbr.rel (%p504) target = $region40
        $region39: #{tpu_custom_call.1} parent=35 // pred_region
          %s507 = sand.u32 %s77, 1
          %s508 = scalar_lea.sflag [#allocation3], %s507
          %s509 = sand.u32 %s77, 1
          %s510 = scalar_lea.vmem [#allocation2], %s509
          %512 = dma.done %s508, 16
        $region40: #{tpu_custom_call.1} parent=35 // pred_fallthru
          _
      $region36: #{tpu_custom_call.1} parent=5 // pred_fallthru
        _
    $region6: #{tpu_custom_call.1} parent=1 // loop_footer
      %s15 = sadd.s32 1, %s11
    $region7: #{tpu_custom_call.1} parent=1 // loop_footer_branch
      %10 = sbr.rel target = $region3
    $region8: #{tpu_custom_call.1} parent=1 // loop_exit
      _
    %513 = vsyncpa [#allocation3], 1
    %s514 = scalar_lea.sflag [#allocation3], 1
    %515 = vsyncpa %s514, 1

</llo_original>
